<compile_context>
chip_gen: v7x
topology: tpu7x:2x2x1
jax: 0.10.0
libtpu: 0.0.40
codegen_flags: <defaults>
</compile_context>

<pallas_src>
import functools

import jax
import jax.numpy as jnp
from jax.experimental import pallas as pl
from jax.experimental.pallas import tpu as pltpu


# ---------------------------------------------------------------------------
# Shared kernel pieces
# ---------------------------------------------------------------------------
def _qk_scores(q_ref, k_ref):
    # scores = q @ k^T without an explicit transpose (contract the last dims).
    # bf16 MXU operands, f32 accumulation.
    return jax.lax.dot_general(
        q_ref[...], k_ref[...],
        dimension_numbers=(((1,), (1,)), ((), ())),
        preferred_element_type=jnp.float32)


def _attend_and_store(scores, v, o_ref, threshold):
    """softmax + threshold-sparsify + renormalize + @V for one (TQ, S) tile."""
    smax = jnp.max(scores, axis=-1, keepdims=True)              # (TQ, 1)
    e = jnp.exp(scores - smax)                                   # f32: keeps the
    s = jnp.sum(e, axis=-1, keepdims=True)                       # discrete select exact
    # attn >= threshold  <=>  e >= threshold * s  (softmax divide eliminated).
    e_keep = jnp.where(e >= threshold * s, e, 0.0)
    # reference: attn_kept/(sum(attn_kept)+1e-6) == e_keep/(sum(e_keep)+1e-6*s)
    denom = jnp.sum(e_keep, axis=-1, keepdims=True) + 1e-6 * s
    out = jnp.dot(e_keep.astype(v.dtype), v, preferred_element_type=jnp.float32)
    out = out * pl.reciprocal(denom, approx=True)
    o_ref[...] = out.astype(o_ref.dtype)


# ---------------------------------------------------------------------------
# Resident path: K/V stay in VMEM per (b, h)
# ---------------------------------------------------------------------------
def _resident_kernel(q_ref, k_ref, v_ref, o_ref, *, threshold, causal):
    scores = _qk_scores(q_ref, k_ref)                            # (TQ, S) f32
    if causal:
        tq, skv = scores.shape
        row = pl.program_id(2) * tq + jax.lax.broadcasted_iota(jnp.int32, (tq, skv), 0)
        col = jax.lax.broadcasted_iota(jnp.int32, (tq, skv), 1)
        scores = jnp.where(col <= row, scores, -jnp.inf)
    _attend_and_store(scores, v_ref[...], o_ref, threshold)


def _resident_kernel_masked(q_ref, k_ref, v_ref, m_ref, o_ref, *, threshold):
    scores = _qk_scores(q_ref, k_ref)
    scores = jnp.where(m_ref[...] == 0, -jnp.inf, scores)        # int8 0/1 mask
    _attend_and_store(scores, v_ref[...], o_ref, threshold)


# ---------------------------------------------------------------------------
# Chunked path: flash-style two-pass over KV chunks (long sequences / small VMEM)
# ---------------------------------------------------------------------------
def _chunked_body(q_ref, k_ref, v_ref, m_ref, o_ref,
                  mmax, ssum, ksum, acc, threshold, causal):
    phase = pl.program_id(3)          # 0: row max + sum(e);  1: threshold + @V
    j = pl.program_id(4)              # kv-chunk index
    n_kv = pl.num_programs(4)

    @pl.when((phase == 0) & (j == 0))
    def _():
        mmax[...] = jnp.full_like(mmax, -jnp.inf)
        ssum[...] = jnp.zeros_like(ssum)
        ksum[...] = jnp.zeros_like(ksum)
        acc[...] = jnp.zeros_like(acc)

    scores = _qk_scores(q_ref, k_ref)                            # (TQ, TK) f32
    tq, tk = scores.shape
    if causal:
        row = pl.program_id(2) * tq + jax.lax.broadcasted_iota(jnp.int32, (tq, tk), 0)
        col = j * tk + jax.lax.broadcasted_iota(jnp.int32, (tq, tk), 1)
        scores = jnp.where(col <= row, scores, -jnp.inf)
    elif m_ref is not None:
        scores = jnp.where(m_ref[...] == 0, -jnp.inf, scores)

    @pl.when(phase == 0)
    def _():  # pass 1: online (rescaled) softmax denominator
        m_old = mmax[...]
        m_new = jnp.maximum(m_old, jnp.max(scores, axis=-1, keepdims=True))
        m_safe = jnp.where(m_new == -jnp.inf, 0.0, m_new)        # fully-masked chunk
        alpha = jnp.exp(m_old - m_safe)
        p = jnp.exp(scores - m_safe)
        ssum[...] = alpha * ssum[...] + jnp.sum(p, axis=-1, keepdims=True)
        mmax[...] = m_new

    @pl.when(phase == 1)
    def _():  # pass 2: recompute e with the global max, threshold, accumulate @V
        s = ssum[...]
        m_safe = jnp.where(mmax[...] == -jnp.inf, 0.0, mmax[...])
        e = jnp.exp(scores - m_safe)
        e_keep = jnp.where(e >= threshold * s, e, 0.0)
        ksum[...] += jnp.sum(e_keep, axis=-1, keepdims=True)
        acc[...] += jnp.dot(e_keep.astype(v_ref.dtype), v_ref[...],
                            preferred_element_type=jnp.float32)

    @pl.when((phase == 1) & (j == n_kv - 1))
    def _():
        denom = ksum[...] + 1e-6 * ssum[...]
        o_ref[...] = (acc[...] * pl.reciprocal(denom, approx=True)).astype(o_ref.dtype)


def _chunked_kernel(q_ref, k_ref, v_ref, o_ref, mmax, ssum, ksum, acc,
                    *, threshold, causal):
    _chunked_body(q_ref, k_ref, v_ref, None, o_ref, mmax, ssum, ksum, acc,
                  threshold, causal)


def _chunked_kernel_masked(q_ref, k_ref, v_ref, m_ref, o_ref, mmax, ssum, ksum, acc,
                           *, threshold):
    _chunked_body(q_ref, k_ref, v_ref, m_ref, o_ref, mmax, ssum, ksum, acc,
                  threshold, False)


# ---------------------------------------------------------------------------
# Tiling heuristics
# ---------------------------------------------------------------------------
def _vmem_budget_bytes():
    # ~0.6 of per-core VMEM: headroom for Mosaic temporaries, matters most on
    # 64 MiB parts (v7x).  Same budget is used for tile selection and the
    # compiler vmem limit (keeps them consistent).
    try:
        cap = pltpu.get_tpu_info().vmem_capacity_bytes
    except Exception:
        cap = 64 * 2**20
    return int(cap * 0.6)


def _tile_candidates(S, mult):
    cands = {S} | {t for t in (2048, 1024, 512, 256, 128, 64, 32, 16, 8)
                   if t <= S and S % t == 0 and t % mult == 0}
    return sorted(cands, reverse=True)


def _pick_tile(S, mult, fits):
    for t in _tile_candidates(S, mult):
        if fits(t):
            return t
    return None


def _resident_vmem_bytes(tq, S, D, csz, osz, msz):
    q_tile = 2 * tq * D * csz              # q tile, double buffered
    o_tile = 2 * tq * D * osz              # out tile, double buffered
    kv = 2 * 2 * S * D * csz               # K + V resident, double buffered
    msk = 2 * tq * S * msz                 # int8 mask tile, double buffered
    tmp = 4 * tq * S * 4 + tq * S * csz    # scores/e/e_keep/select + low-prec copy
    return q_tile + o_tile + kv + msk + tmp


def _chunked_vmem_bytes(tq, tk, D, csz, osz, msz):
    q_tile = 2 * tq * D * csz
    o_tile = 2 * tq * D * osz
    kv = 2 * 2 * tk * D * csz
    msk = 2 * tq * tk * msz
    scr = tq * D * 4 + 3 * tq * 128 * 4    # acc + (m, s, ks) with lane padding
    tmp = 4 * tq * tk * 4 + tq * tk * csz
    return q_tile + o_tile + kv + msk + scr + tmp


def _prep_mask(mask, S):
    m = jnp.asarray(mask)
    m = m.reshape((1,) * (4 - m.ndim) + m.shape)
    Bm, Hm = int(m.shape[0]), int(m.shape[1])
    # (mask != 0) BEFORE the int8 cast: fractional nonzero mask values must not
    # truncate to 0 (the reference compares `mask == 0` on the original dtype).
    return jnp.broadcast_to(m != 0, (Bm, Hm, S, S)).astype(jnp.int8)


# ---------------------------------------------------------------------------
# Public wrapper
# ---------------------------------------------------------------------------
def sparse_attention(q, k, v, mask=None, threshold=0.1, *,
                     causal=False, q_tile=None, kv_tile=None,
                     compute_dtype=jnp.bfloat16):
    """Pallas implementation of SparseAttention.forward.

    q, k, v: [B, H, S, D].  mask: optional, broadcastable to [B, H, S, S]; any
    dtype, entries == 0 are masked out.  causal=True builds a lower-triangular
    mask in-kernel (no mask DMA) and takes precedence over `mask`.

    q/k/v are cast to `compute_dtype` (default bf16) so both matmuls use native
    MXU passes; accumulation, softmax and the threshold comparison stay in f32.
    Fully-masked rows yield NaN (matches the reference).
    """
    B, H, S, D = q.shape
    out_dtype = q.dtype
    cdt = jnp.dtype(compute_dtype)
    qc, kc, vc = q.astype(cdt), k.astype(cdt), v.astype(cdt)

    has_mask = (mask is not None) and (not causal)
    csz, osz = cdt.itemsize, jnp.dtype(out_dtype).itemsize
    msz = 1 if has_mask else 0
    budget = _vmem_budget_bytes()
    q_mult = 32 if has_mask else 8          # int8 mask tile wants sublane mult of 32

    TQ = q_tile if q_tile is not None else _pick_tile(
        S, q_mult, lambda t: _resident_vmem_bytes(t, S, D, csz, osz, msz) <= budget)
    chunked = (kv_tile is not None and kv_tile < S) or TQ is None

    if not chunked:
        assert S % TQ == 0, "query tile must divide the sequence length"
        grid = (B, H, S // TQ)
        q_spec = pl.BlockSpec((pl.Squeezed(), pl.Squeezed(), TQ, D),
                              lambda b, h, i: (b, h, i, 0))
        kv_spec = pl.BlockSpec((pl.Squeezed(), pl.Squeezed(), S, D),
                               lambda b, h, i: (b, h, 0, 0))     # resident per (b, h)
        out_spec = pl.BlockSpec((pl.Squeezed(), pl.Squeezed(), TQ, D),
                                lambda b, h, i: (b, h, i, 0))
        scratch = []
        # Megacore shards B/H only: splitting the q-tile axis would make both
        # cores stream the same resident K/V (doubling HBM traffic).
        dims = ("parallel", "parallel", "arbitrary")
        if has_mask:
            m = _prep_mask(mask, S)
            Bm, Hm = int(m.shape[0]), int(m.shape[1])
            m_spec = pl.BlockSpec(
                (pl.Squeezed(), pl.Squeezed(), TQ, S),
                lambda b, h, i: (b if Bm > 1 else 0, h if Hm > 1 else 0, i, 0))
            kernel = functools.partial(_resident_kernel_masked, threshold=threshold)
            in_specs, operands = [q_spec, kv_spec, kv_spec, m_spec], (qc, kc, vc, m)
        else:
            kernel = functools.partial(_resident_kernel, threshold=threshold,
                                       causal=causal)
            in_specs, operands = [q_spec, kv_spec, kv_spec], (qc, kc, vc)
    else:
        kv_mult = 128 if has_mask else 8    # mask chunk lane dim must be 128-aligned
        TK = kv_tile if kv_tile is not None else (
            _pick_tile(S, kv_mult, lambda t: t <= 512)
            or _tile_candidates(S, kv_mult)[-1])
        TQ = q_tile if q_tile is not None else (
            _pick_tile(S, q_mult,
                       lambda t: _chunked_vmem_bytes(t, TK, D, csz, osz, msz) <= budget)
            or _tile_candidates(S, q_mult)[-1])
        assert S % TQ == 0 and S % TK == 0, "tiles must divide the sequence length"
        if has_mask:
            assert TK % 128 == 0 or TK == S, "masked KV tile must be 128-aligned"
        n_kv = S // TK
        grid = (B, H, S // TQ, 2, n_kv)     # phase 0: max/sum, phase 1: threshold+@V
        q_spec = pl.BlockSpec((pl.Squeezed(), pl.Squeezed(), TQ, D),
                              lambda b, h, i, p, j: (b, h, i, 0))
        k_spec = pl.BlockSpec((pl.Squeezed(), pl.Squeezed(), TK, D),
                              lambda b, h, i, p, j: (b, h, j, 0))
        # V is only consumed in phase 1; pin it to chunk 0 during phase 0 so it
        # is not re-fetched uselessly (Pallas skips DMA when the index repeats).
        v_spec = pl.BlockSpec((pl.Squeezed(), pl.Squeezed(), TK, D),
                              lambda b, h, i, p, j: (b, h, j * p, 0))
        out_spec = pl.BlockSpec((pl.Squeezed(), pl.Squeezed(), TQ, D),
                                lambda b, h, i, p, j: (b, h, i, 0))
        scratch = ([pltpu.VMEM((TQ, 1), jnp.float32)] * 3
                   + [pltpu.VMEM((TQ, D), jnp.float32)])
        dims = ("parallel", "parallel", "parallel", "arbitrary", "arbitrary")
        if has_mask:
            m = _prep_mask(mask, S)
            Bm, Hm = int(m.shape[0]), int(m.shape[1])
            m_spec = pl.BlockSpec(
                (pl.Squeezed(), pl.Squeezed(), TQ, TK),
                lambda b, h, i, p, j: (b if Bm > 1 else 0, h if Hm > 1 else 0, i, j))
            kernel = functools.partial(_chunked_kernel_masked, threshold=threshold)
            in_specs, operands = [q_spec, k_spec, v_spec, m_spec], (qc, kc, vc, m)
        else:
            kernel = functools.partial(_chunked_kernel, threshold=threshold,
                                       causal=causal)
            in_specs, operands = [q_spec, k_spec, v_spec], (qc, kc, vc)

    return pl.pallas_call(
        kernel,
        out_shape=jax.ShapeDtypeStruct((B, H, S, D), out_dtype),
        grid_spec=pltpu.PrefetchScalarGridSpec(
            num_scalar_prefetch=0,
            grid=grid,
            in_specs=in_specs,
            out_specs=out_spec,
            scratch_shapes=scratch,
        ),
        compiler_params=pltpu.CompilerParams(
            dimension_semantics=dims,
            vmem_limit_bytes=budget,
        ),
    )(*operands)


# ---------------------------------------------------------------------------
# Pure-JAX reference (faithful to the PyTorch module)
# ---------------------------------------------------------------------------
def _reference(q, k, v, mask=None, threshold=0.1):
    scores = jnp.einsum("bhqd,bhkd->bhqk", q, k)
    if mask is not None:
        scores = jnp.where(mask == 0, -jnp.inf, scores)
    attn = jax.nn.softmax(scores, axis=-1)
    attn = jnp.where(attn < threshold, 0.0, attn)
    attn_sum = jnp.sum(attn, axis=-1, keepdims=True) + 1e-6
    attn = attn / attn_sum
    return jnp.einsum("bhqk,bhkd->bhqd", attn, v)


if __name__ == "__main__":
    root = jax.random.PRNGKey(0)

    def make_qkv(key, shape):
        ks = jax.random.split(key, 3)
        # Round-trip through bf16 so the kernel's bf16 compute cast is lossless
        # and the f32 reference sees exactly the values the MXU sees.
        return tuple(jax.random.normal(kk, shape, jnp.float32)
                     .astype(jnp.bfloat16).astype(jnp.float32) for kk in ks)

    tol = dict(atol=3e-2, rtol=3e-2)

    # ---- resident path: B=2, H=2, S=8, D=32 --------------------------------
    B, H, S, D = 2, 2, 8, 32
    key0, key1, key2 = jax.random.split(root, 3)
    q, k, v = make_qkv(key0, (B, H, S, D))

    out = jax.block_until_ready(sparse_attention(q, k, v, threshold=0.1))
    ref = _reference(q, k, v, None, 0.1)
    assert out.shape == (B, H, S, D)
    assert jnp.allclose(out, ref, **tol), "mismatch (resident, no mask)"

    causal_mask = jnp.tril(jnp.ones((S, S), jnp.int32))[None, None]
    ref_c = _reference(q, k, v, causal_mask, 0.1)
    out_m = jax.block_until_ready(sparse_attention(q, k, v, mask=causal_mask))
    assert jnp.allclose(out_m, ref_c, **tol), "mismatch (resident, DMA mask)"

    out_c = jax.block_until_ready(sparse_attention(q, k, v, causal=True))
    assert jnp.allclose(out_c, ref_c, **tol), "mismatch (resident, in-kernel causal)"

    # ---- chunked (flash-style two-pass) path, forced via kv_tile ------------
    S2 = 64
    q2, k2, v2 = make_qkv(key1, (B, H, S2, D))
    out2 = jax.block_until_ready(
        sparse_attention(q2, k2, v2, q_tile=32, kv_tile=32))
    ref2 = _reference(q2, k2, v2, None, 0.1)
    assert jnp.allclose(out2, ref2, **tol), "mismatch (chunked, no mask)"

    causal2 = jnp.tril(jnp.ones((S2, S2), jnp.int32))[None, None]
    out2c = jax.block_until_ready(
        sparse_attention(q2, k2, v2, causal=True, q_tile=32, kv_tile=32))
    ref2c = _reference(q2, k2, v2, causal2, 0.1)
    assert jnp.allclose(out2c, ref2c, **tol), "mismatch (chunked, in-kernel causal)"

    # ---- chunked path with a DMA'd fractional float broadcast mask ----------
    S3 = 256
    q3, k3, v3 = make_qkv(key2, (1, 1, S3, D))
    mask3 = 0.5 * jnp.tril(jnp.ones((S3, S3), jnp.float32))[None, None]
    out3 = jax.block_until_ready(
        sparse_attention(q3, k3, v3, mask=mask3, kv_tile=128))
    ref3 = _reference(q3, k3, v3, mask3, 0.1)
    assert jnp.allclose(out3, ref3, **tol), "mismatch (chunked, DMA mask)"

    print("KERNEL_OK")
</pallas_src>

<mosaic_0001>
module attributes {stable_mosaic.version = 11 : i64} {
  func.func @_resident_kernel(%arg0: i32, %arg1: i32, %arg2: i32, %arg3: memref<1x1x8x32xbf16, #tpu.memory_space<vmem>>, %arg4: memref<1x1x8x32xbf16, #tpu.memory_space<vmem>>, %arg5: memref<1x1x8x32xbf16, #tpu.memory_space<vmem>>, %arg6: memref<1x1x8x32xf32, #tpu.memory_space<vmem>>) attributes {dimension_semantics = [#tpu.dimension_semantics<parallel>, #tpu.dimension_semantics<parallel>, #tpu.dimension_semantics<arbitrary>], iteration_bounds = array<i64: 2, 2, 1>, scalar_prefetch = 0 : i64, scratch_operands = 0 : i64, tpu.core_type = #tpu.core_type<tc>, window_params = [{transform_indices = @transform_0, window_bounds = array<i64: 1, 1, 8, 32>}, {transform_indices = @transform_1, window_bounds = array<i64: 1, 1, 8, 32>}, {transform_indices = @transform_2, window_bounds = array<i64: 1, 1, 8, 32>}, {transform_indices = @transform_3, window_bounds = array<i64: 1, 1, 8, 32>}]} {
    %c0 = arith.constant 0 : index
    %c0_0 = arith.constant 0 : index
    %c0_1 = arith.constant 0 : index
    %c0_2 = arith.constant 0 : index
    %0 = vector.load %arg3[%c0, %c0_0, %c0_1, %c0_2] : memref<1x1x8x32xbf16, #tpu.memory_space<vmem>>, vector<1x1x8x32xbf16>
    %1 = vector.shape_cast %0 : vector<1x1x8x32xbf16> to vector<8x32xbf16>
    %c0_3 = arith.constant 0 : index
    %c0_4 = arith.constant 0 : index
    %c0_5 = arith.constant 0 : index
    %c0_6 = arith.constant 0 : index
    %2 = vector.load %arg4[%c0_3, %c0_4, %c0_5, %c0_6] : memref<1x1x8x32xbf16, #tpu.memory_space<vmem>>, vector<1x1x8x32xbf16>
    %3 = vector.shape_cast %2 : vector<1x1x8x32xbf16> to vector<8x32xbf16>
    %cst = arith.constant dense<0.000000e+00> : vector<8x8xf32>
    %4 = tpu.matmul %1, %3, %cst {dimension_numbers = #tpu.dot_dimension_numbers<[1], [1], [0], [0], [0, 0, 1, 0], [], []>} : vector<8x32xbf16>, vector<8x32xbf16>, vector<8x8xf32> -> vector<8x8xf32>
    %c0_7 = arith.constant 0 : index
    %c0_8 = arith.constant 0 : index
    %c0_9 = arith.constant 0 : index
    %c0_10 = arith.constant 0 : index
    %5 = vector.load %arg5[%c0_7, %c0_8, %c0_9, %c0_10] : memref<1x1x8x32xbf16, #tpu.memory_space<vmem>>, vector<1x1x8x32xbf16>
    %6 = vector.shape_cast %5 : vector<1x1x8x32xbf16> to vector<8x32xbf16>
    %cst_11 = arith.constant dense<0xFF800000> : vector<8xf32>
    %7 = vector.multi_reduction <maximumf>, %4, %cst_11 [1] : vector<8x8xf32> to vector<8xf32>
    %8 = vector.shape_cast %7 : vector<8xf32> to vector<8x1xf32>
    %9 = vector.broadcast %8 : vector<8x1xf32> to vector<8x8xf32>
    %10 = arith.subf %4, %9 : vector<8x8xf32>
    %11 = math.exp %10 : vector<8x8xf32>
    %cst_12 = arith.constant dense<0.000000e+00> : vector<8xf32>
    %12 = vector.multi_reduction <add>, %11, %cst_12 [1] : vector<8x8xf32> to vector<8xf32>
    %13 = vector.shape_cast %12 : vector<8xf32> to vector<8x1xf32>
    %cst_13 = arith.constant 1.000000e-01 : f32
    %14 = vector.broadcast %cst_13 : f32 to vector<8x1xf32>
    %15 = arith.mulf %14, %13 : vector<8x1xf32>
    %16 = vector.broadcast %15 : vector<8x1xf32> to vector<8x8xf32>
    %17 = arith.cmpf oge, %11, %16 : vector<8x8xf32>
    %cst_14 = arith.constant 0.000000e+00 : f32
    %18 = vector.broadcast %cst_14 : f32 to vector<8x8xf32>
    %19 = arith.select %17, %11, %18 : vector<8x8xi1>, vector<8x8xf32>
    %cst_15 = arith.constant dense<0.000000e+00> : vector<8xf32>
    %20 = vector.multi_reduction <add>, %19, %cst_15 [1] : vector<8x8xf32> to vector<8xf32>
    %21 = vector.shape_cast %20 : vector<8xf32> to vector<8x1xf32>
    %cst_16 = arith.constant 9.99999997E-7 : f32
    %22 = vector.broadcast %cst_16 : f32 to vector<8x1xf32>
    %23 = arith.mulf %22, %13 : vector<8x1xf32>
    %24 = arith.addf %21, %23 : vector<8x1xf32>
    %25 = arith.truncf %19 : vector<8x8xf32> to vector<8x8xbf16>
    %cst_17 = arith.constant dense<0.000000e+00> : vector<8x32xf32>
    %26 = tpu.matmul %25, %6, %cst_17 {dimension_numbers = #tpu.dot_dimension_numbers<[1], [0], [0], [1], [0, 0, 1, 1], [], []>} : vector<8x8xbf16>, vector<8x32xbf16>, vector<8x32xf32> -> vector<8x32xf32>
    %27 = tpu.reciprocal %24 {approx = true} : vector<8x1xf32> -> vector<8x1xf32>
    %28 = vector.broadcast %27 : vector<8x1xf32> to vector<8x32xf32>
    %29 = arith.mulf %26, %28 : vector<8x32xf32>
    %c0_18 = arith.constant 0 : index
    %c0_19 = arith.constant 0 : index
    %c0_20 = arith.constant 0 : index
    %c0_21 = arith.constant 0 : index
    %30 = vector.load %arg6[%c0_18, %c0_19, %c0_20, %c0_21] : memref<1x1x8x32xf32, #tpu.memory_space<vmem>>, vector<1x1x8x32xf32>
    %31 = vector.shape_cast %30 : vector<1x1x8x32xf32> to vector<8x32xf32>
    %32 = vector.shape_cast %29 : vector<8x32xf32> to vector<1x1x8x32xf32>
    tpu.vector_store %arg6[%c0_18, %c0_19, %c0_20, %c0_21], %32 {strides = array<i32>} : memref<1x1x8x32xf32, #tpu.memory_space<vmem>>, vector<1x1x8x32xf32>,
    return
  }
  func.func @transform_0(%arg0: i32, %arg1: i32, %arg2: i32) -> (i32, i32, i32, i32) {
    %c0_i32 = arith.constant 0 : i32
    %c0_i32_0 = arith.constant 0 : i32
    return %arg0, %arg1, %arg2, %c0_i32 : i32, i32, i32, i32
  }
  func.func @transform_1(%arg0: i32, %arg1: i32, %arg2: i32) -> (i32, i32, i32, i32) {
    %c0_i32 = arith.constant 0 : i32
    %c0_i32_0 = arith.constant 0 : i32
    %c0_i32_1 = arith.constant 0 : i32
    return %arg0, %arg1, %c0_i32, %c0_i32_0 : i32, i32, i32, i32
  }
  func.func @transform_2(%arg0: i32, %arg1: i32, %arg2: i32) -> (i32, i32, i32, i32) {
    %c0_i32 = arith.constant 0 : i32
    %c0_i32_0 = arith.constant 0 : i32
    %c0_i32_1 = arith.constant 0 : i32
    return %arg0, %arg1, %c0_i32, %c0_i32_0 : i32, i32, i32, i32
  }
  func.func @transform_3(%arg0: i32, %arg1: i32, %arg2: i32) -> (i32, i32, i32, i32) {
    %c0_i32 = arith.constant 0 : i32
    %c0_i32_0 = arith.constant 0 : i32
    return %arg0, %arg1, %arg2, %c0_i32 : i32, i32, i32, i32
  }
}

</mosaic_0001>

<llo_original>
// kernel: tpu_custom_call.1
$region0: #{tpu_custom_call.1}
  #allocation0 [shape = 'u32[]', space=smem, size = 0x4, offset = 0x4, fixed_abs, tag = 'smem constant byte address 0x4 - core index']
  #allocation1 [shape = 'u32[144,128]{1,0:T(1,128)}', space=vmem, size = 0x12000, scoped, tag = 'internal scratch']
  %s0 = inlined_call_operand.hbm [shape: bf16[2,2,8,32], index: 0, kind: input, shape index: {}]
  %s1 = inlined_call_operand.hbm [shape: bf16[2,2,8,32], index: 1, kind: input, shape index: {}]
  %s2 = inlined_call_operand.hbm [shape: bf16[2,2,8,32], index: 2, kind: input, shape index: {}]
  %s3 = inlined_call_operand.hbm [shape: f32[2,2,8,32], index: 3, kind: output, shape index: {}]
  %s4 = sld [smem:[#allocation0]]
  $region57: #{tpu_custom_call.1} parent=0
    _
  %s6 = ssub.s32 1, %s4
  %s7 = scalar_select 0, %s6, %s4
  $region1: #{tpu_custom_call.1} parent=0
    #allocation2 [shape = 'u8[4096]{0}', space=vmem, size = 0x1000, scoped, tag = 'input window, operand 0']
    #allocation3 [shape = 's32[2]{0}', space=sflag, size = 0x8, scoped, tag = 'scoped memory for tpu_custom_call.1']
    #allocation4 [shape = 's32[2]{0}', space=sflag, size = 0x8, scoped, tag = 'scoped memory for tpu_custom_call.1']
    #allocation5 [shape = 'u8[4096]{0}', space=vmem, size = 0x1000, scoped, tag = 'input window, operand 1']
    #allocation6 [shape = 's32[2]{0}', space=sflag, size = 0x8, scoped, tag = 'scoped memory for tpu_custom_call.1']
    #allocation7 [shape = 'u8[4096]{0}', space=vmem, size = 0x1000, scoped, tag = 'input window, operand 2']
    #allocation8 [shape = 'u8[8192]{0}', space=vmem, size = 0x2000, scoped, tag = 'output window, operand 0']
    %8 = vsyncpa [#allocation3], 0
    %s9 = scalar_lea.sflag [#allocation3], 1
    %10 = vsyncpa %s9, 0
    %11 = vsyncpa [#allocation6], 0
    %s12 = scalar_lea.sflag [#allocation6], 1
    %13 = vsyncpa %s12, 0
    %14 = vsyncpa [#allocation4], 0
    %s15 = scalar_lea.sflag [#allocation4], 1
    %16 = vsyncpa %s15, 0
    loop: start=0, step=1, limit=6
    $region2: #{tpu_custom_call.1} parent=1 // loop_pre_header
      _
    $region3: #{tpu_custom_call.1} parent=1 // loop_header
      %s18 = sphi 0, %s22
      %p19 = scmp.ge.s32.totalorder %s18, 6
      %s25 = sphi 0, %s44
      %s26 = sphi 0, %s40
      %s27 = sphi 0, %s36
      %s28 = sphi 0, %s25
      %s29 = sphi 0, %s26
      %s30 = sphi 0, %s27
      %s31 = sphi 0, %s28
      %s32 = sphi 0, %s29
      %s33 = sphi 0, %s30
      %s51 = sphi 0, %s53
      %s54 = sphi 0, %s51
      %s55 = sphi 0, %s54
      %s71 = sphi 0, %s55
      %s79 = sphi 0, %s81
      %s82 = sphi 0, %s79
      %s83 = sphi 0, %s82
      %s99 = sphi 0, %s83
      %s107 = sphi 0, %s109
      %s110 = sphi 0, %s107
      %s111 = sphi 0, %s110
      %s127 = sphi 0, %s111
      %s137 = sphi 0, %s139
      %s140 = sphi 0, %s137
      %s141 = sphi 0, %s140
      %s157 = sphi 0, %s141
    $region4: #{tpu_custom_call.1} parent=1 // loop_header_branch
      %21 = sbr.rel (%p19) target = $region8
    $region5: #{tpu_custom_call.1} parent=1 // loop_body
      %s23 = ssub.s32 %s18, 1
      %s24 = ssub.s32 %s18, 2
      %s34 = sadd.s32 1, %s27
      %p35 = scmp.ge.s32.totalorder %s34, 1
      %s36 = scalar_select %p35, 0, %s34
      %s37 = sadd.s32 1, %s26
      %s38 = scalar_select %p35, %s37, %s26
      %p39 = scmp.ge.s32.totalorder %s38, 2
      %s40 = scalar_select %p39, 0, %s38
      %s41 = sadd.s32 1, %s25
      %s42 = scalar_select %p39, %s41, %s25
      %p43 = scmp.ge.s32.totalorder %s42, 2
      %s44 = scalar_select %p43, 0, %s42
      %s45 = ssub.s32 %s25, %s44
      %s46 = ssub.s32 %s26, %s40
      %s47 = sor.u32 %s45, %s46
      %s48 = ssub.s32 %s27, %s36
      %s49 = sor.u32 %s47, %s48
      %p50 = scmp.eq.s32.totalorder %s49, 0
      %s52 = sadd.s32 %s51, 1
      %s53 = scalar_select %p50, %s51, %s52
      %p56 = pneg %p50
      %p57 = scmp.eq.s32.totalorder %s18, 3
      %p58 = por %p56, %p57
      %p59 = scmp.ne.s32.totalorder %s51, %s54
      %p60 = scmp.eq.s32.totalorder %s18, 0
      %p61 = por %p59, %p60
      %p62 = scmp.ne.s32.totalorder %s51, %s54
      %p63 = scmp.eq.s32.totalorder %s23, 3
      %p64 = por %p62, %p63
      %p65 = scmp.ne.s32.totalorder %s54, %s55
      %p66 = scmp.eq.s32.totalorder %s23, 0
      %p67 = por %p65, %p66
      %p68 = scmp.ne.s32.totalorder %s54, %s55
      %p69 = scmp.eq.s32.totalorder %s24, 3
      %p70 = por %p68, %p69
      %p72 = scmp.ne.s32.totalorder %s55, %s71
      %p73 = scmp.eq.s32.totalorder %s24, 0
      %p74 = por %p72, %p73
      %s75 = ssub.s32 %s25, %s44
      %s76 = ssub.s32 %s26, %s40
      %s77 = sor.u32 %s75, %s76
      %p78 = scmp.eq.s32.totalorder %s77, 0
      %s80 = sadd.s32 %s79, 1
      %s81 = scalar_select %p78, %s79, %s80
      %p84 = pneg %p78
      %p85 = scmp.eq.s32.totalorder %s18, 3
      %p86 = por %p84, %p85
      %p87 = scmp.ne.s32.totalorder %s79, %s82
      %p88 = scmp.eq.s32.totalorder %s18, 0
      %p89 = por %p87, %p88
      %p90 = scmp.ne.s32.totalorder %s79, %s82
      %p91 = scmp.eq.s32.totalorder %s23, 3
      %p92 = por %p90, %p91
      %p93 = scmp.ne.s32.totalorder %s82, %s83
      %p94 = scmp.eq.s32.totalorder %s23, 0
      %p95 = por %p93, %p94
      %p96 = scmp.ne.s32.totalorder %s82, %s83
      %p97 = scmp.eq.s32.totalorder %s24, 3
      %p98 = por %p96, %p97
      %p100 = scmp.ne.s32.totalorder %s83, %s99
      %p101 = scmp.eq.s32.totalorder %s24, 0
      %p102 = por %p100, %p101
      %s103 = ssub.s32 %s25, %s44
      %s104 = ssub.s32 %s26, %s40
      %s105 = sor.u32 %s103, %s104
      %p106 = scmp.eq.s32.totalorder %s105, 0
      %s108 = sadd.s32 %s107, 1
      %s109 = scalar_select %p106, %s107, %s108
      %p112 = pneg %p106
      %p113 = scmp.eq.s32.totalorder %s18, 3
      %p114 = por %p112, %p113
      %p115 = scmp.ne.s32.totalorder %s107, %s110
      %p116 = scmp.eq.s32.totalorder %s18, 0
      %p117 = por %p115, %p116
      %p118 = scmp.ne.s32.totalorder %s107, %s110
      %p119 = scmp.eq.s32.totalorder %s23, 3
      %p120 = por %p118, %p119
      %p121 = scmp.ne.s32.totalorder %s110, %s111
      %p122 = scmp.eq.s32.totalorder %s23, 0
      %p123 = por %p121, %p122
      %p124 = scmp.ne.s32.totalorder %s110, %s111
      %p125 = scmp.eq.s32.totalorder %s24, 3
      %p126 = por %p124, %p125
      %p128 = scmp.ne.s32.totalorder %s111, %s127
      %p129 = scmp.eq.s32.totalorder %s24, 0
      %p130 = por %p128, %p129
      %s131 = ssub.s32 %s25, %s44
      %s132 = ssub.s32 %s26, %s40
      %s133 = sor.u32 %s131, %s132
      %s134 = ssub.s32 %s27, %s36
      %s135 = sor.u32 %s133, %s134
      %p136 = scmp.eq.s32.totalorder %s135, 0
      %s138 = sadd.s32 %s137, 1
      %s139 = scalar_select %p136, %s137, %s138
      %p142 = pneg %p136
      %p143 = scmp.eq.s32.totalorder %s18, 3
      %p144 = por %p142, %p143
      %p145 = scmp.ne.s32.totalorder %s137, %s140
      %p146 = scmp.eq.s32.totalorder %s18, 0
      %p147 = por %p145, %p146
      %p148 = scmp.ne.s32.totalorder %s137, %s140
      %p149 = scmp.eq.s32.totalorder %s23, 3
      %p150 = por %p148, %p149
      %p151 = scmp.ne.s32.totalorder %s140, %s141
      %p152 = scmp.eq.s32.totalorder %s23, 0
      %p153 = por %p151, %p152
      %p154 = scmp.ne.s32.totalorder %s140, %s141
      %p155 = scmp.eq.s32.totalorder %s24, 3
      %p156 = por %p154, %p155
      %p158 = scmp.ne.s32.totalorder %s141, %s157
      %p159 = scmp.eq.s32.totalorder %s24, 0
      %p160 = por %p158, %p159
      %p161 = scmp.le.s32.totalorder 1, %s18
      %p162 = scmp.lt.s32.totalorder %s18, 5
      %p163 = pnand %p161, %p162
      %p164 = pneg %p163
      // Predicated region
      $region9: #{tpu_custom_call.1} parent=5 // pred_check
        _
      $region10: #{tpu_custom_call.1} parent=5 // pred_check_branch
        %166 = sbr.rel (%p163) target = $region12
      $region11: #{tpu_custom_call.1} parent=5 // pred_region
        %s167 = ssub.s32 %s18, 1
      $region12: #{tpu_custom_call.1} parent=5 // pred_fallthru
        _
      %p168 = scmp.lt.s32.totalorder %s18, 4
      // Predicated region
      $region13: #{tpu_custom_call.1} parent=5 // pred_check
        %p169 = pneg %p168
      $region14: #{tpu_custom_call.1} parent=5 // pred_check_branch
        %171 = sbr.rel (%p169) target = $region16
      $region15: #{tpu_custom_call.1} parent=5 // pred_region
        // Predicated region
        $region17: #{tpu_custom_call.1} parent=15 // pred_check
          %p172 = pneg %p61
        $region18: #{tpu_custom_call.1} parent=15 // pred_check_branch
          %174 = sbr.rel (%p172) target = $region20
        $region19: #{tpu_custom_call.1} parent=15 // pred_region
          %s175 = sand.u32 %s51, 1
          %s176 = scalar_lea.sflag [#allocation3], %s175
          %s177 = sand.u32 %s51, 1
          %s178 = smul.addr %s177, 4
          %s179 = scalar_lea.vmem [#allocation2], %s178
          %s181 = ssub.s32 64, 64
          %182 = vsyncadd %s176, %s181
          %s183 = sadd.s32 %s27, %s26
          %s184 = smul.addr %s25, 2
          %s185 = sadd.s32 %s183, %s184
          %s186 = smul.addr %s185, 64
          %s187 = scalar_lea.hbm %s0, %s186
          %s189 = sshll.u32 %s179, 4
          %s190 = int_to_ptr.vmem [resolvable:$true] %s189
          %192 = dma.hbm_to_vmem [thread:$0]  %s187, 64, %s190, %s176
        $region20: #{tpu_custom_call.1} parent=15 // pred_fallthru
          _
        // Predicated region
        $region21: #{tpu_custom_call.1} parent=15 // pred_check
          %p193 = pneg %p89
        $region22: #{tpu_custom_call.1} parent=15 // pred_check_branch
          %195 = sbr.rel (%p193) target = $region24
        $region23: #{tpu_custom_call.1} parent=15 // pred_region
          %s196 = sand.u32 %s18, 1
          %s197 = scalar_lea.sflag [#allocation6], %s196
          %s198 = sand.u32 %s79, 1
          %s199 = smul.addr %s198, 4
          %s200 = scalar_lea.vmem [#allocation5], %s199
          %s202 = ssub.s32 64, 64
          %203 = vsyncadd %s197, %s202
          %s204 = smul.addr %s25, 2
          %s205 = sadd.s32 %s26, %s204
          %s206 = smul.addr %s205, 64
          %s207 = scalar_lea.hbm %s1, %s206
          %s209 = sshll.u32 %s200, 4
          %s210 = int_to_ptr.vmem [resolvable:$true] %s209
          %212 = dma.hbm_to_vmem [thread:$0]  %s207, 64, %s210, %s197
        $region24: #{tpu_custom_call.1} parent=15 // pred_fallthru
          _
        // Predicated region
        $region25: #{tpu_custom_call.1} parent=15 // pred_check
          %p213 = pneg %p117
        $region26: #{tpu_custom_call.1} parent=15 // pred_check_branch
          %215 = sbr.rel (%p213) target = $region28
        $region27: #{tpu_custom_call.1} parent=15 // pred_region
          %s216 = sand.u32 %s18, 1
          %s217 = scalar_lea.sflag [#allocation6], %s216
          %s218 = sand.u32 %s107, 1
          %s219 = smul.addr %s218, 4
          %s220 = scalar_lea.vmem [#allocation7], %s219
          %s222 = ssub.s32 64, 64
          %223 = vsyncadd %s217, %s222
          %s224 = smul.addr %s25, 2
          %s225 = sadd.s32 %s26, %s224
          %s226 = smul.addr %s225, 64
          %s227 = scalar_lea.hbm %s2, %s226
          %s229 = sshll.u32 %s220, 4
          %s230 = int_to_ptr.vmem [resolvable:$true] %s229
          %232 = dma.hbm_to_vmem [thread:$0]  %s227, 64, %s230, %s217
        $region28: #{tpu_custom_call.1} parent=15 // pred_fallthru
          _
      $region16: #{tpu_custom_call.1} parent=5 // pred_fallthru
        _
      %p233 = scmp.le.s32.totalorder 1, %s18
      %p234 = scmp.lt.s32.totalorder %s18, 5
      %p235 = pnand %p233, %p234
      %p236 = pneg %p235
      // Predicated region
      $region29: #{tpu_custom_call.1} parent=5 // pred_check
        _
      $region30: #{tpu_custom_call.1} parent=5 // pred_check_branch
        %238 = sbr.rel (%p235) target = $region32
      $region31: #{tpu_custom_call.1} parent=5 // pred_region
        %s239 = ssub.s32 %s18, 1
        %s240 = sand.u32 %s54, 1
        %s241 = scalar_lea.sflag [#allocation3], %s240
        %s242 = sand.u32 %s54, 1
        %s243 = smul.addr %s242, 4
        %s244 = scalar_lea.vmem [#allocation2], %s243
        // Predicated region
        $region33: #{tpu_custom_call.1} parent=31 // pred_check
          %p245 = pneg %p67
        $region34: #{tpu_custom_call.1} parent=31 // pred_check_branch
          %247 = sbr.rel (%p245) target = $region36
        $region35: #{tpu_custom_call.1} parent=31 // pred_region
          %248 = dma.done %s241, 64
        $region36: #{tpu_custom_call.1} parent=31 // pred_fallthru
          _
        %s249 = sand.u32 %s23, 1
        %s250 = scalar_lea.sflag [#allocation6], %s249
        %s251 = sand.u32 %s82, 1
        %s252 = smul.addr %s251, 4
        %s253 = scalar_lea.vmem [#allocation5], %s252
        // Predicated region
        $region37: #{tpu_custom_call.1} parent=31 // pred_check
          %p254 = pneg %p95
        $region38: #{tpu_custom_call.1} parent=31 // pred_check_branch
          %256 = sbr.rel (%p254) target = $region40
        $region39: #{tpu_custom_call.1} parent=31 // pred_region
          %257 = dma.done %s250, 64
        $region40: #{tpu_custom_call.1} parent=31 // pred_fallthru
          _
        %s258 = sand.u32 %s23, 1
        %s259 = scalar_lea.sflag [#allocation6], %s258
        %s260 = sand.u32 %s110, 1
        %s261 = smul.addr %s260, 4
        %s262 = scalar_lea.vmem [#allocation7], %s261
        // Predicated region
        $region41: #{tpu_custom_call.1} parent=31 // pred_check
          %p263 = pneg %p123
        $region42: #{tpu_custom_call.1} parent=31 // pred_check_branch
          %265 = sbr.rel (%p263) target = $region44
        $region43: #{tpu_custom_call.1} parent=31 // pred_region
          %266 = dma.done %s259, 64
        $region44: #{tpu_custom_call.1} parent=31 // pred_fallthru
          _
        %s267 = sand.u32 %s54, 1
        %s268 = scalar_lea.sflag [#allocation3], %s267
        %s269 = sand.u32 %s54, 1
        %s270 = smul.addr %s269, 4
        %s271 = scalar_lea.vmem [#allocation2], %s270
        %p272 = pneg %p67
        %p273 = pneg %p64
        %s274 = sand.u32 %s23, 1
        %s275 = scalar_lea.sflag [#allocation6], %s274
        %s276 = sand.u32 %s82, 1
        %s277 = smul.addr %s276, 4
        %s278 = scalar_lea.vmem [#allocation5], %s277
        %p279 = pneg %p95
        %p280 = pneg %p92
        %s281 = sand.u32 %s23, 1
        %s282 = scalar_lea.sflag [#allocation6], %s281
        %s283 = sand.u32 %s110, 1
        %s284 = smul.addr %s283, 4
        %s285 = scalar_lea.vmem [#allocation7], %s284
        %p286 = pneg %p123
        %p287 = pneg %p120
        %p288 = pneg %p153
        %p289 = pneg %p150
        %s290 = sand.u32 %s140, 1
        %s291 = scalar_lea.sflag [#allocation4], %s290
        %s292 = sand.u32 %s140, 1
        %s293 = smul.addr %s292, 8
        %s294 = scalar_lea.vmem [#allocation8], %s293
        %v296 = vld [vmem:[%s244] sm:$0xf]
        %v297 = vld [vmem:[%s253] sm:$0xf]
        %vm298 = vcmask 261120
        %v300 = vsel %vm298, %v296, 0
        %v303 = vsel %vm298, %v297, 0
        %305 = vmatprep.subr.bf16.mxu0 0
        %306 = vmatpush1.bf16.xpose.msra.mxu0 %v303
        %307 = vmatprep.subr.bf16.mxu0 0
        %308 = vmatpush1.bf16.xpose.msra.mxu0 0
        %309 = vmatprep.subr.bf16.mxu0 0
        %310 = vmatpush1.bf16.xpose.msra.mxu0 0
        %311 = vmatprep.subr.bf16.mxu0 0
        %312 = vmatpush1.bf16.xpose.msra.mxu0 0
        %313 = vmatprep.subr.bf16.mxu0 0
        %314 = vmatpush1.bf16.xpose.msra.mxu0 0
        %315 = vmatprep.subr.bf16.mxu0 0
        %316 = vmatpush1.bf16.xpose.msra.mxu0 0
        %317 = vmatprep.subr.bf16.mxu0 0
        %318 = vmatpush1.bf16.xpose.msra.mxu0 0
        %319 = vmatprep.subr.bf16.mxu0 0
        %320 = vmatpush1.bf16.xpose.msra.mxu0 0
        %321 = vmatprep.subr.bf16.mxu0 0
        %322 = vmatpush1.bf16.xpose.msra.mxu0 0
        %323 = vmatprep.subr.bf16.mxu0 0
        %324 = vmatpush1.bf16.xpose.msra.mxu0 0
        %325 = vmatprep.subr.bf16.mxu0 0
        %326 = vmatpush1.bf16.xpose.msra.mxu0 0
        %327 = vmatprep.subr.bf16.mxu0 0
        %328 = vmatpush1.bf16.xpose.msra.mxu0 0
        %329 = vmatprep.subr.bf16.mxu0 0
        %330 = vmatpush1.bf16.xpose.msra.mxu0 0
        %331 = vmatprep.subr.bf16.mxu0 0
        %332 = vmatpush1.bf16.xpose.msra.mxu0 0
        %333 = vmatprep.subr.bf16.mxu0 0
        %334 = vmatpush1.bf16.xpose.msra.mxu0 0
        %335 = vmatprep.subr.bf16.mxu0 0
        %336 = vmatpush1.bf16.xpose.msra.mxu0 0
        %337 = vmatprep.mubr.bf16.mxu0 0
        %338 = vmatmul.mubr.bf16.gmra.mrb[0].mxu0 %v300
        %v339 = vpop.f32.mrb[0].mxu0
        %v340 = vadd.f32 0.0, %v339
        %v341 = vpop.f32.mrb[0].mxu0
        %v342 = vpop.f32.mrb[0].mxu0
        %v343 = vpop.f32.mrb[0].mxu0
        %344 = vdwg.mxu0
        %v345 = vld [vmem:[%s262] sm:$0xf]
        %vm346 = vcmask 64512
        %v347 = vsel %vm346, %v340, -inf
        %348 = vmax.xlane.f32.xlu0 %v347
        %v349 = vpop.xlane.xlu0 %348
        %v350 = vsub.f32 %v340, %v349
        %v351 = vmul.f32 %v350, 1.442695
        %v352 = vpow.pop %v351
        %v353 = vsel %vm346, %v352, 0.0
        %354 = vadd.xlane.f32.xlu0 %v353
        %v355 = vpop.xlane.xlu0 %354
        %v356 = vmul.f32 %v355, 0.1
        %vm357 = vcmp.ge.f32.partialorder %v352, %v356
        %v358 = vsel %vm357, %v352, 0.0
        %v359 = vsel %vm346, %v358, 0.0
        %360 = vadd.xlane.f32.xlu0 %v359
        %v361 = vpop.xlane.xlu0 %360
        %v362 = vmul.f32 %v355, 1e-06
        %v363 = vadd.f32 %v361, %v362
        %v364 = vpack.c.bf16 %v358, %v358
        %v366 = vsel %vm346, %v364, 0
        %vm368 = vcmask 1043456
        %v370 = vsel %vm368, %v345, 0
        %372 = vmatprep.subr.bf16.mxu0 0
        %373 = vmatpush1.bf16.msra.mxu0 %v370
        %374 = vmatprep.subr.bf16.mxu0 0
        %375 = vmatpush1.bf16.msra.mxu0 0
        %376 = vmatprep.subr.bf16.mxu0 0
        %377 = vmatpush1.bf16.msra.mxu0 0
        %378 = vmatprep.subr.bf16.mxu0 0
        %379 = vmatpush1.bf16.msra.mxu0 0
        %380 = vmatprep.subr.bf16.mxu0 0
        %381 = vmatpush1.bf16.msra.mxu0 0
        %382 = vmatprep.subr.bf16.mxu0 0
        %383 = vmatpush1.bf16.msra.mxu0 0
        %384 = vmatprep.subr.bf16.mxu0 0
        %385 = vmatpush1.bf16.msra.mxu0 0
        %386 = vmatprep.subr.bf16.mxu0 0
        %387 = vmatpush1.bf16.msra.mxu0 0
        %388 = vmatprep.subr.bf16.mxu0 0
        %389 = vmatpush1.bf16.msra.mxu0 0
        %390 = vmatprep.subr.bf16.mxu0 0
        %391 = vmatpush1.bf16.msra.mxu0 0
        %392 = vmatprep.subr.bf16.mxu0 0
        %393 = vmatpush1.bf16.msra.mxu0 0
        %394 = vmatprep.subr.bf16.mxu0 0
        %395 = vmatpush1.bf16.msra.mxu0 0
        %396 = vmatprep.subr.bf16.mxu0 0
        %397 = vmatpush1.bf16.msra.mxu0 0
        %398 = vmatprep.subr.bf16.mxu0 0
        %399 = vmatpush1.bf16.msra.mxu0 0
        %400 = vmatprep.subr.bf16.mxu0 0
        %401 = vmatpush1.bf16.msra.mxu0 0
        %402 = vmatprep.subr.bf16.mxu0 0
        %403 = vmatpush1.bf16.msra.mxu0 0
        %404 = vmatprep.mubr.bf16.mxu0 0
        %405 = vmatmul.mubr.bf16.gmra.mrb[0].mxu0 %v366
        %v406 = vpop.f32.mrb[0].mxu0
        %v407 = vadd.f32 0.0, %v406
        %v408 = vpop.f32.mrb[0].mxu0
        %v409 = vpop.f32.mrb[0].mxu0
        %v410 = vpop.f32.mrb[0].mxu0
        %411 = vdwg.mxu0
        %v412 = vrcp.pop %v363
        %v413 = vmul.f32 %v407, %v412
        %414 = vst.msk [vmem:[%s294] sm:$0xff] %vm298, %v413
        %s415 = sand.u32 %s140, 1
        %s416 = scalar_lea.sflag [#allocation4], %s415
        %s417 = sand.u32 %s140, 1
        %s418 = smul.addr %s417, 8
        %s419 = scalar_lea.vmem [#allocation8], %s418
        // Predicated region
        $region45: #{tpu_custom_call.1} parent=31 // pred_check
          %p420 = pneg %p150
        $region46: #{tpu_custom_call.1} parent=31 // pred_check_branch
          %422 = sbr.rel (%p420) target = $region48
        $region47: #{tpu_custom_call.1} parent=31 // pred_region
          %s424 = ssub.s32 128, 128
          %425 = vsyncadd %s416, %s424
          %s426 = sadd.s32 %s30, %s29
          %s427 = smul.addr %s28, 2
          %s428 = sadd.s32 %s426, %s427
          %s429 = smul.addr %s428, 128
          %s430 = scalar_lea.hbm %s3, %s429
          %s432 = sshll.u32 %s419, 4
          %s433 = int_to_ptr.vmem [resolvable:$true] %s432
          %435 = dma.vmem_to_hbm [thread:$0]  %s433, 128, %s430, %s416
        $region48: #{tpu_custom_call.1} parent=31 // pred_fallthru
          _
      $region32: #{tpu_custom_call.1} parent=5 // pred_fallthru
        _
      %p436 = scmp.le.s32.totalorder 2, %s18
      // Predicated region
      $region49: #{tpu_custom_call.1} parent=5 // pred_check
        %p437 = pneg %p436
      $region50: #{tpu_custom_call.1} parent=5 // pred_check_branch
        %439 = sbr.rel (%p437) target = $region52
      $region51: #{tpu_custom_call.1} parent=5 // pred_region
        %s440 = ssub.s32 %s18, 2
        // Predicated region
        $region53: #{tpu_custom_call.1} parent=51 // pred_check
          %p441 = pneg %p156
        $region54: #{tpu_custom_call.1} parent=51 // pred_check_branch
          %443 = sbr.rel (%p441) target = $region56
        $region55: #{tpu_custom_call.1} parent=51 // pred_region
          %s444 = sand.u32 %s141, 1
          %s445 = scalar_lea.sflag [#allocation4], %s444
          %s446 = sand.u32 %s141, 1
          %s447 = smul.addr %s446, 8
          %s448 = scalar_lea.vmem [#allocation8], %s447
          %449 = dma.done %s445, 128
        $region56: #{tpu_custom_call.1} parent=51 // pred_fallthru
          _
      $region52: #{tpu_custom_call.1} parent=5 // pred_fallthru
        _
    $region6: #{tpu_custom_call.1} parent=1 // loop_footer
      %s22 = sadd.s32 1, %s18
    $region7: #{tpu_custom_call.1} parent=1 // loop_footer_branch
      %17 = sbr.rel target = $region3
    $region8: #{tpu_custom_call.1} parent=1 // loop_exit
      _
    %450 = vsyncpa [#allocation3], 1
    %s451 = scalar_lea.sflag [#allocation3], 1
    %452 = vsyncpa %s451, 1
    %453 = vsyncpa [#allocation6], 1
    %s454 = scalar_lea.sflag [#allocation6], 1
    %455 = vsyncpa %s454, 1
    %456 = vsyncpa [#allocation4], 1
    %s457 = scalar_lea.sflag [#allocation4], 1
    %458 = vsyncpa %s457, 1

</llo_original>
